<compile_context>
chip_gen: v7x
topology: tpu7x:2x2x1
jax: 0.10.0
libtpu: 0.0.40
codegen_flags: <defaults>
</compile_context>

<pallas_src>
import functools

import jax
import jax.numpy as jnp
from jax.experimental import pallas as pl
from jax.experimental.pallas import tpu as pltpu

_LANE = 128  # TPU lane width (last-dim alignment for the class tile)


def _round_up(x, m):
    return ((x + m - 1) // m) * m


def _linear_kernel(x_ref, w_ref, b_ref, o_ref):
    # x_ref: (tm, D)  input dtype (cast in-kernel)
    # w_ref: (D, C_pad) compute dtype (resident across the grid)
    # b_ref: (1, C_pad) f32
    # o_ref: (tm, C_pad) output dtype
    x = x_ref[...].astype(w_ref.dtype)  # in-kernel cast: free VPU work
    acc = jnp.dot(x, w_ref[...], preferred_element_type=jnp.float32)
    o_ref[...] = (acc + b_ref[...]).astype(o_ref.dtype)


def prepare_detr_head_params(weight, bias, compute_dtype=jnp.bfloat16):
    """One-time (module-init) prep of nn.Linear params: transpose, lane-pad, cast.

    weight: (C, D) PyTorch nn.Linear layout; bias: (C,)
    returns (w_packed (D, C_pad) compute_dtype, b_packed (1, C_pad) f32)
    """
    C, D = weight.shape
    C_pad = _round_up(max(C, _LANE), _LANE)
    w_packed = jnp.pad(weight.T.astype(compute_dtype), ((0, 0), (0, C_pad - C)))
    b_packed = jnp.pad(bias.astype(jnp.float32).reshape(1, C),
                       ((0, 0), (0, C_pad - C)))
    return w_packed, b_packed


@functools.partial(
    jax.jit,
    static_argnames=("num_classes", "tm", "out_dtype", "return_lane_padded"))
def detr_head_forward(x, w_packed, b_packed, *, num_classes, tm=2048,
                      out_dtype=None, return_lane_padded=False):
    """y = x @ W.T + b (nn.Linear semantics) with pre-packed params.

    x:        (B, Q, D) — fed to the kernel at native dtype (no XLA pre-cast/pad)
    w_packed: (D, C_pad) — from prepare_detr_head_params (compute dtype)
    b_packed: (1, C_pad) f32
    returns   (B, Q, num_classes) in out_dtype (default: x.dtype),
              or (B, Q, C_pad) if return_lane_padded=True (skips the slice pass).
    """
    B, Q, D = x.shape
    Dw, C_pad = w_packed.shape
    assert Dw == D, "weight feature dim must match x"
    assert C_pad % _LANE == 0 and num_classes <= C_pad
    M = B * Q
    out_dtype = x.dtype if out_dtype is None else out_dtype

    # Row tile: multiple of 8 (sublane), clamped to the problem size.  At DETR
    # sizes (M ~ 19200, D = 256) the default 2048 gives an even 10-step grid.
    tm_eff = max(8, min(_round_up(tm, 8), _round_up(M, 8)))
    grid_m = pl.cdiv(M, tm_eff)

    x2d = x.reshape(M, D)  # free contiguous collapse; no copy

    cost = pl.CostEstimate(
        flops=2 * M * D * C_pad,
        transcendentals=0,
        bytes_accessed=(M * D * x.dtype.itemsize
                        + D * C_pad * jnp.dtype(w_packed.dtype).itemsize
                        + C_pad * 4
                        + M * C_pad * jnp.dtype(out_dtype).itemsize),
    )

    out2d = pl.pallas_call(
        _linear_kernel,
        out_shape=jax.ShapeDtypeStruct((M, C_pad), out_dtype),
        grid_spec=pltpu.PrefetchScalarGridSpec(
            num_scalar_prefetch=0,
            grid=(grid_m,),
            in_specs=[
                pl.BlockSpec((tm_eff, D), lambda i: (i, 0)),   # row tile of x
                pl.BlockSpec((D, C_pad), lambda i: (0, 0)),    # resident weight
                pl.BlockSpec((1, C_pad), lambda i: (0, 0)),    # bias row
            ],
            out_specs=pl.BlockSpec((tm_eff, C_pad), lambda i: (i, 0)),
        ),
        compiler_params=pltpu.CompilerParams(
            dimension_semantics=("parallel",)),
        cost_estimate=cost,
    )(x2d, w_packed, b_packed)

    if return_lane_padded:
        # Lane-dense slab; pad columns carry 0-weight/0-bias logits.
        return out2d.reshape(B, Q, C_pad)
    if num_classes == C_pad:
        return out2d.reshape(B, Q, num_classes)
    # Exact nn.Linear output-shape parity.  This slice is an extra HBM pass;
    # production consumers should prefer return_lane_padded=True.
    return out2d[:, :num_classes].reshape(B, Q, num_classes)


if __name__ == "__main__":
    # Small, DETR-flavored shapes: batch=2, num_queries=8, hidden=32, classes=16.
    B, Q, D, C = 2, 8, 32, 16

    key = jax.random.PRNGKey(0)
    kx, kw, kb = jax.random.split(key, 3)

    x = jax.random.normal(kx, (B, Q, D), dtype=jnp.float32)
    # Deterministic parameter init (synthetic; not a checkpoint load).
    weight = jax.random.normal(kw, (C, D), dtype=jnp.float32) * 0.02
    bias = jax.random.normal(kb, (C,), dtype=jnp.float32) * 0.02

    y_ref = x @ weight.T + bias

    # f32 compute path: exact-ish check against the plain-JAX reference.
    w32, b32 = prepare_detr_head_params(weight, bias, compute_dtype=jnp.float32)
    y_f32 = detr_head_forward(x, w32, b32, num_classes=C, out_dtype=jnp.float32)
    y_f32 = jax.block_until_ready(y_f32)
    assert y_f32.shape == (B, Q, C)
    assert jnp.allclose(y_f32, y_ref, atol=1e-4, rtol=1e-4)

    # Bandwidth-optimized configuration: bf16 weight in HBM, in-kernel bf16
    # cast of x, bf16 output.  (Documented precision tradeoff vs f32 nn.Linear.)
    wbf, bbf = prepare_detr_head_params(weight, bias, compute_dtype=jnp.bfloat16)
    y_bf16 = detr_head_forward(x, wbf, bbf, num_classes=C, out_dtype=jnp.bfloat16)
    y_bf16 = jax.block_until_ready(y_bf16)
    assert y_bf16.shape == (B, Q, C)
    assert jnp.allclose(y_bf16.astype(jnp.float32), y_ref, atol=2e-2, rtol=2e-2)

    # Lane-padded fast path: no post-call slice (consumer ignores pad columns).
    y_pad = detr_head_forward(x, wbf, bbf, num_classes=C,
                              out_dtype=jnp.bfloat16, return_lane_padded=True)
    y_pad = jax.block_until_ready(y_pad)
    assert y_pad.shape == (B, Q, 128)
    assert jnp.allclose(y_pad[..., :C].astype(jnp.float32), y_ref,
                        atol=2e-2, rtol=2e-2)

    print("KERNEL_OK")
</pallas_src>

<mosaic_0001>
module attributes {stable_mosaic.version = 11 : i64} {
  func.func @_linear_kernel(%arg0: i32, %arg1: memref<16x32xf32, #tpu.memory_space<vmem>>, %arg2: memref<32x128xf32, #tpu.memory_space<vmem>>, %arg3: memref<1x128xf32, #tpu.memory_space<vmem>>, %arg4: memref<16x128xf32, #tpu.memory_space<vmem>>) attributes {dimension_semantics = [#tpu.dimension_semantics<parallel>], iteration_bounds = array<i64: 1>, scalar_prefetch = 0 : i64, scratch_operands = 0 : i64, tpu.core_type = #tpu.core_type<tc>, window_params = [{transform_indices = @transform_0, window_bounds = array<i64: 16, 32>}, {pipeline_mode = #tpu.pipeline_mode<synchronous>, transform_indices = @transform_1, window_bounds = array<i64: 32, 128>}, {pipeline_mode = #tpu.pipeline_mode<synchronous>, transform_indices = @transform_2, window_bounds = array<i64: 1, 128>}, {transform_indices = @transform_3, window_bounds = array<i64: 16, 128>}]} {
    %c0 = arith.constant 0 : index
    %c0_0 = arith.constant 0 : index
    %0 = vector.load %arg1[%c0, %c0_0] : memref<16x32xf32, #tpu.memory_space<vmem>>, vector<16x32xf32>
    %c0_1 = arith.constant 0 : index
    %c0_2 = arith.constant 0 : index
    %1 = vector.load %arg2[%c0_1, %c0_2] : memref<32x128xf32, #tpu.memory_space<vmem>>, vector<32x128xf32>
    %cst = arith.constant dense<0.000000e+00> : vector<16x128xf32>
    %2 = tpu.matmul %0, %1, %cst {dimension_numbers = #tpu.dot_dimension_numbers<[1], [0], [0], [1], [0, 0, 1, 1], [], []>} : vector<16x32xf32>, vector<32x128xf32>, vector<16x128xf32> -> vector<16x128xf32>
    %c0_3 = arith.constant 0 : index
    %c0_4 = arith.constant 0 : index
    %3 = vector.load %arg3[%c0_3, %c0_4] : memref<1x128xf32, #tpu.memory_space<vmem>>, vector<1x128xf32>
    %4 = vector.broadcast %3 : vector<1x128xf32> to vector<16x128xf32>
    %5 = arith.addf %2, %4 : vector<16x128xf32>
    %c0_5 = arith.constant 0 : index
    %c0_6 = arith.constant 0 : index
    %6 = vector.load %arg4[%c0_5, %c0_6] : memref<16x128xf32, #tpu.memory_space<vmem>>, vector<16x128xf32>
    tpu.vector_store %arg4[%c0_5, %c0_6], %5 {strides = array<i32>} : memref<16x128xf32, #tpu.memory_space<vmem>>, vector<16x128xf32>,
    return
  }
  func.func @transform_0(%arg0: i32) -> (i32, i32) {
    %c0_i32 = arith.constant 0 : i32
    %c0_i32_0 = arith.constant 0 : i32
    return %arg0, %c0_i32 : i32, i32
  }
  func.func @transform_1(%arg0: i32) -> (i32, i32) {
    %c0_i32 = arith.constant 0 : i32
    %c0_i32_0 = arith.constant 0 : i32
    %c0_i32_1 = arith.constant 0 : i32
    return %c0_i32, %c0_i32_0 : i32, i32
  }
  func.func @transform_2(%arg0: i32) -> (i32, i32) {
    %c0_i32 = arith.constant 0 : i32
    %c0_i32_0 = arith.constant 0 : i32
    %c0_i32_1 = arith.constant 0 : i32
    return %c0_i32, %c0_i32_0 : i32, i32
  }
  func.func @transform_3(%arg0: i32) -> (i32, i32) {
    %c0_i32 = arith.constant 0 : i32
    %c0_i32_0 = arith.constant 0 : i32
    return %arg0, %c0_i32 : i32, i32
  }
}

</mosaic_0001>

<llo_original>
// kernel: detr_head_forward.1
$region0: #{detr_head_forward.1}
  #allocation0 [shape = 'u32[]', space=smem, size = 0x4, offset = 0x4, fixed_abs, tag = 'smem constant byte address 0x4 - core index']
  #allocation1 [shape = 'u32[144,128]{1,0:T(1,128)}', space=vmem, size = 0x12000, scoped, tag = 'internal scratch']
  %s0 = inlined_call_operand.hbm [shape: f32[16,32], index: 0, kind: input, shape index: {}]
  %s1 = inlined_call_operand.hbm [shape: f32[32,128], index: 1, kind: input, shape index: {}]
  %s2 = inlined_call_operand.vmem [shape: f32[1,128], index: 2, kind: input, shape index: {}]
  %s3 = inlined_call_operand.vmem [shape: f32[16,128], index: 3, kind: output, shape index: {}]
  %s4 = sld [smem:[#allocation0]]
  $region30: #{detr_head_forward.1} parent=0
    _
  %s6 = ssub.s32 1, %s4
  %s7 = scalar_select 0, %s6, %s4
  $region1: #{detr_head_forward.1} parent=0
    #allocation2 [shape = 'u8[8192]{0}', space=vmem, size = 0x2000, scoped, tag = 'input window, operand 0, single buffered']
    #allocation3 [shape = 's32[1]{0}', space=sflag, size = 0x4, scoped, tag = 'scoped memory for detr_head_forward.1']
    #allocation4 [shape = 'u8[16384]{0}', space=vmem, size = 0x4000, scoped, tag = 'input window, operand 1, single buffered']
    #allocation5 [shape = 's32[1]{0}', space=sflag, size = 0x4, scoped, tag = 'scoped memory for detr_head_forward.1']
    %8 = vsyncpa [#allocation3], 0
    %9 = vsyncpa [#allocation5], 0
    // Predicated region
    $region2: #{detr_head_forward.1} parent=1 // pred_check
      _
    $region3: #{detr_head_forward.1} parent=1 // pred_check_branch
      %11 = sbr.rel (0) target = $region5
    $region4: #{detr_head_forward.1} parent=1 // pred_region
      %s13 = ssub.s32 256, 256
      %14 = vsyncadd [#allocation3], %s13
      %s15 = sshll.u32 [#allocation2], 4
      %s16 = int_to_ptr.vmem [resolvable:$true] %s15
      %21 = dma.hbm_to_vmem [thread:$0]  %s0, 256, %s16, [#allocation3], 128, 128, 8
    $region5: #{detr_head_forward.1} parent=1 // pred_fallthru
      _
    // Predicated region
    $region6: #{detr_head_forward.1} parent=1 // pred_check
      _
    $region7: #{detr_head_forward.1} parent=1 // pred_check_branch
      %23 = sbr.rel (0) target = $region9
    $region8: #{detr_head_forward.1} parent=1 // pred_region
      %s25 = ssub.s32 512, 512
      %26 = vsyncadd [#allocation5], %s25
      %s27 = sshll.u32 [#allocation4], 4
      %s28 = int_to_ptr.vmem [resolvable:$true] %s27
      %33 = dma.hbm_to_vmem [thread:$0]  %s1, 512, %s28, [#allocation5], 128, 128, 8
    $region9: #{detr_head_forward.1} parent=1 // pred_fallthru
      _
    // Predicated region
    $region10: #{detr_head_forward.1} parent=1 // pred_check
      _
    $region11: #{detr_head_forward.1} parent=1 // pred_check_branch
      %35 = sbr.rel (0) target = $region13
    $region12: #{detr_head_forward.1} parent=1 // pred_region
      _
    $region13: #{detr_head_forward.1} parent=1 // pred_fallthru
      _
    // Predicated region
    $region14: #{detr_head_forward.1} parent=1 // pred_check
      _
    $region15: #{detr_head_forward.1} parent=1 // pred_check_branch
      %37 = sbr.rel (0) target = $region17
    $region16: #{detr_head_forward.1} parent=1 // pred_region
      %38 = dma.done [#allocation3], 256
    $region17: #{detr_head_forward.1} parent=1 // pred_fallthru
      _
    // Predicated region
    $region18: #{detr_head_forward.1} parent=1 // pred_check
      _
    $region19: #{detr_head_forward.1} parent=1 // pred_check_branch
      %40 = sbr.rel (0) target = $region21
    $region20: #{detr_head_forward.1} parent=1 // pred_region
      %41 = dma.done [#allocation5], 512
    $region21: #{detr_head_forward.1} parent=1 // pred_fallthru
      _
    %v42 = vld [vmem:[#allocation2] sm:$0xff]
    %v43 = vld [vmem:[#allocation2 + $0x8] sm:$0xff]
    %v44 = vld [vmem:[#allocation4] sm:$0xff]
    %v45 = vld [vmem:[#allocation4 + $0x8] sm:$0xff]
    %v46 = vld [vmem:[#allocation4 + $0x10] sm:$0xff]
    %v47 = vld [vmem:[#allocation4 + $0x18] sm:$0xff]
    %v48 = vld [vmem:[%s2] sm:$0x1]
    %v50 = vlaneseq
    %v51 = vshrl.u32 %v50, 7
    %v52 = vsub.s32 0, %v51
    %v53 = vrot.slane %v48, %v52
    %vm55 = vcmask 261120
    %v57 = vsel %vm55, %v42, 0
    %v60 = vsel %vm55, %v43, 0
    %62 = vmatprep.subr.mxu0 0.0
    %63 = vmatpush1.msra.mxu0 %v44
    %64 = vmatprep.subr.mxu0 0.0
    %65 = vmatpush1.msra.mxu0 %v45
    %66 = vmatprep.subr.mxu0 0.0
    %67 = vmatpush1.msra.mxu0 %v46
    %68 = vmatprep.subr.mxu0 0.0
    %69 = vmatpush1.msra.mxu0 %v47
    %70 = vmatprep.subr.mxu0 0.0
    %71 = vmatpush1.msra.mxu0 0.0
    %72 = vmatprep.subr.mxu0 0.0
    %73 = vmatpush1.msra.mxu0 0.0
    %74 = vmatprep.subr.mxu0 0.0
    %75 = vmatpush1.msra.mxu0 0.0
    %76 = vmatprep.subr.mxu0 0.0
    %77 = vmatpush1.msra.mxu0 0.0
    %78 = vmatprep.subr.mxu0 0.0
    %79 = vmatpush1.msra.mxu0 0.0
    %80 = vmatprep.subr.mxu0 0.0
    %81 = vmatpush1.msra.mxu0 0.0
    %82 = vmatprep.subr.mxu0 0.0
    %83 = vmatpush1.msra.mxu0 0.0
    %84 = vmatprep.subr.mxu0 0.0
    %85 = vmatpush1.msra.mxu0 0.0
    %86 = vmatprep.subr.mxu0 0.0
    %87 = vmatpush1.msra.mxu0 0.0
    %88 = vmatprep.subr.mxu0 0.0
    %89 = vmatpush1.msra.mxu0 0.0
    %90 = vmatprep.subr.mxu0 0.0
    %91 = vmatpush1.msra.mxu0 0.0
    %92 = vmatprep.subr.mxu0 0.0
    %93 = vmatpush1.msra.mxu0 0.0
    %94 = vmatprep.subr.mxu0 0.0
    %95 = vmatpush1.msra.mxu0 0.0
    %96 = vmatprep.subr.mxu0 0.0
    %97 = vmatpush1.msra.mxu0 0.0
    %98 = vmatprep.subr.mxu0 0.0
    %99 = vmatpush1.msra.mxu0 0.0
    %100 = vmatprep.subr.mxu0 0.0
    %101 = vmatpush1.msra.mxu0 0.0
    %102 = vmatprep.subr.mxu0 0.0
    %103 = vmatpush1.msra.mxu0 0.0
    %104 = vmatprep.subr.mxu0 0.0
    %105 = vmatpush1.msra.mxu0 0.0
    %106 = vmatprep.subr.mxu0 0.0
    %107 = vmatpush1.msra.mxu0 0.0
    %108 = vmatprep.subr.mxu0 0.0
    %109 = vmatpush1.msra.mxu0 0.0
    %110 = vmatprep.subr.mxu0 0.0
    %111 = vmatpush1.msra.mxu0 0.0
    %112 = vmatprep.subr.mxu0 0.0
    %113 = vmatpush1.msra.mxu0 0.0
    %114 = vmatprep.subr.mxu0 0.0
    %115 = vmatpush1.msra.mxu0 0.0
    %116 = vmatprep.subr.mxu0 0.0
    %117 = vmatpush1.msra.mxu0 0.0
    %118 = vmatprep.subr.mxu0 0.0
    %119 = vmatpush1.msra.mxu0 0.0
    %120 = vmatprep.subr.mxu0 0.0
    %121 = vmatpush1.msra.mxu0 0.0
    %122 = vmatprep.subr.mxu0 0.0
    %123 = vmatpush1.msra.mxu0 0.0
    %124 = vmatprep.subr.mxu0 0.0
    %125 = vmatpush1.msra.mxu0 0.0
    %126 = vmatprep.mubr.f32.mxu0 0.0
    %127 = vmatmul.mubr.f32.gmra.mrb[0].mxu0 %v57
    %v128 = vpop.f32.mrb[0].mxu0
    %v129 = vadd.f32 %v53, %v128
    %v130 = vpop.f32.mrb[0].mxu0
    %131 = vmatprep.mubr.f32.mxu0 0.0
    %132 = vmatmul.mubr.f32.gmra.mrb[0].mxu0 %v60
    %v133 = vpop.f32.mrb[0].mxu0
    %v134 = vadd.f32 %v53, %v133
    %v135 = vpop.f32.mrb[0].mxu0
    %136 = vdwg.mxu0
    %137 = vst [vmem:[%s3] sm:$0xff] %v129
    %138 = vst [vmem:[%s3 + $0x8] sm:$0xff] %v134
    // Predicated region
    $region22: #{detr_head_forward.1} parent=1 // pred_check
      _
    $region23: #{detr_head_forward.1} parent=1 // pred_check_branch
      %140 = sbr.rel (0) target = $region25
    $region24: #{detr_head_forward.1} parent=1 // pred_region
      _
    $region25: #{detr_head_forward.1} parent=1 // pred_fallthru
      _
    // Predicated region
    $region26: #{detr_head_forward.1} parent=1 // pred_check
      _
    $region27: #{detr_head_forward.1} parent=1 // pred_check_branch
      %142 = sbr.rel (0) target = $region29
    $region28: #{detr_head_forward.1} parent=1 // pred_region
      _
    $region29: #{detr_head_forward.1} parent=1 // pred_fallthru
      _
    %143 = vsyncpa [#allocation3], 1
    %144 = vsyncpa [#allocation5], 1

</llo_original>
